<compile_context>
chip_gen: v5e
topology: v5e:2x2
jax: 0.10.0
libtpu: 0.0.40
codegen_flags: <defaults>
</compile_context>

<pallas_src>
import functools

import jax
import jax.numpy as jnp
from jax import lax
from jax.experimental import pallas as pl
from jax.experimental.pallas import tpu as pltpu


# ----------------------------------------------------------------------------
# Parameter setup (matches torch __init__ exactly, deterministic, no files)
# ----------------------------------------------------------------------------
def make_positional_encoding(input_dim: int, max_len: int = 5000) -> jnp.ndarray:
    pos = jnp.arange(0, max_len, dtype=jnp.float32)[:, None]               # (max_len, 1)
    div = 10000.0 ** (jnp.arange(0, input_dim, 2, dtype=jnp.float32) / input_dim)
    ang = pos / div                                                        # (max_len, D/2)
    enc = jnp.zeros((max_len, input_dim), dtype=jnp.float32)
    enc = enc.at[:, 0::2].set(jnp.sin(ang))
    enc = enc.at[:, 1::2].set(jnp.cos(ang))
    return enc


# ----------------------------------------------------------------------------
# Pallas kernels (refs are 2D: (tb rows, tn lanes))
# ----------------------------------------------------------------------------
def _posenc_kernel_eval(x_ref, enc_ref, o_ref):
    # enc_ref is (1, tn): sublane broadcast against (tb, tn). Compute in f32,
    # cast once on store (no-op for f32 inputs, single convert for bf16).
    y = x_ref[...].astype(jnp.float32) + enc_ref[...].astype(jnp.float32)
    o_ref[...] = y.astype(o_ref.dtype)


def _posenc_kernel_train(x_ref, enc_ref, o_ref, *, seed, threshold, scale,
                         n_cols, block_rows, block_cols):
    # Inverted dropout matching torch.nn.Dropout training semantics.
    y = x_ref[...].astype(jnp.float32) + enc_ref[...].astype(jnp.float32)

    # Global element index -> stateless hash PRNG (independent of tiling,
    # fully parallel across the grid; no hardware PRNG state needed).
    i = pl.program_id(0)
    j = pl.program_id(1)
    rows = lax.broadcasted_iota(jnp.int32, y.shape, 0) + i * block_rows
    cols = lax.broadcasted_iota(jnp.int32, y.shape, 1) + j * block_cols
    gid = (rows * n_cols + cols).astype(jnp.uint32) ^ jnp.uint32(seed)

    # splitmix32-style integer mix -> uniform uint32 bits (pure VPU int ops).
    h = gid
    h = (h ^ (h >> 16)) * jnp.uint32(0x7FEB352D)
    h = (h ^ (h >> 15)) * jnp.uint32(0x846CA68B)
    h = h ^ (h >> 16)

    keep = h >= jnp.uint32(threshold)        # P(drop) = threshold / 2^32 ~= p
    out = jnp.where(keep, y * scale, 0.0)    # scale = 1/(1-p) folded into one mul
    o_ref[...] = out.astype(o_ref.dtype)


# ----------------------------------------------------------------------------
# Wrapper
# ----------------------------------------------------------------------------
def positional_encoding_forward(x, encoding, *, dropout_p: float = 0.1,
                                training: bool = False, seed: int = 0):
    B, S, D = x.shape
    out_dtype = x.dtype
    enc = encoding[:S, :].astype(out_dtype)                 # (S, D), slice like torch

    # Lane-dense flattening: (B, S, D) -> (B, S*D); enc broadcast as one row.
    N = S * D
    x2 = x.reshape(B, N)
    enc2 = enc.reshape(1, N)

    # Tile sizes: last dim a multiple of 128 (or full extent), rows full-B when
    # small else 8-row blocks. Block sizes stay far below scoped VMEM limits.
    if N % 128 == 0:
        tn = min(N, 8 * 1024)
    else:
        tn = N                                              # full extent is always legal
    tb = B if B < 8 else 8

    grid = (pl.cdiv(B, tb), pl.cdiv(N, tn))
    x_spec = pl.BlockSpec((tb, tn), lambda i, j: (i, j))
    enc_spec = pl.BlockSpec((1, tn), lambda i, j: (0, j))
    out_spec = pl.BlockSpec((tb, tn), lambda i, j: (i, j))
    out_shape = jax.ShapeDtypeStruct((B, N), out_dtype)
    cparams = pltpu.CompilerParams(
        dimension_semantics=("parallel", "parallel"))       # stateless -> megacore OK

    if (not training) or dropout_p == 0.0:
        out2 = pl.pallas_call(
            _posenc_kernel_eval,
            grid=grid,
            in_specs=[x_spec, enc_spec],
            out_specs=out_spec,
            out_shape=out_shape,
            compiler_params=cparams,
        )(x2, enc2)
        return out2.reshape(B, S, D)

    if dropout_p >= 1.0:
        # torch.nn.Dropout(p=1.0) zeroes everything; avoid inf scale / NaN.
        return jnp.zeros_like(x)

    threshold = int(dropout_p * 4294967296.0)               # p * 2^32
    scale = 1.0 / (1.0 - dropout_p)
    kernel = functools.partial(
        _posenc_kernel_train,
        seed=int(seed) & 0xFFFFFFFF,
        threshold=threshold,
        scale=scale,
        n_cols=N,
        block_rows=tb,
        block_cols=tn,
    )
    out2 = pl.pallas_call(
        kernel,
        grid=grid,
        in_specs=[x_spec, enc_spec],
        out_specs=out_spec,
        out_shape=out_shape,
        compiler_params=cparams,
    )(x2, enc2)
    return out2.reshape(B, S, D)


# ----------------------------------------------------------------------------
# Main
# ----------------------------------------------------------------------------
if __name__ == "__main__":
    B, S, D = 2, 8, 32          # batch, seq_len, input_dim
    MAX_LEN = 64                # small max_len for the synthetic table

    key = jax.random.PRNGKey(0)
    x = jax.random.normal(key, (B, S, D), dtype=jnp.float32)

    encoding = make_positional_encoding(D, MAX_LEN)
    ref = x + encoding[None, :S, :]

    # Eval-mode forward (dropout is identity) — check against plain-JAX reference.
    out = positional_encoding_forward(x, encoding, dropout_p=0.1, training=False)
    out = jax.block_until_ready(out)
    assert out.shape == (B, S, D)
    assert jnp.allclose(out, ref, atol=1e-6, rtol=1e-6)

    # Training-mode forward (exercises the in-kernel dropout path, deterministic seed).
    p = 0.1
    out_tr = positional_encoding_forward(x, encoding, dropout_p=p,
                                         training=True, seed=123)
    out_tr = jax.block_until_ready(out_tr)
    assert out_tr.shape == (B, S, D)
    # Kept elements must equal (x + enc) / (1 - p); dropped elements are exactly 0.
    kept = out_tr != 0
    assert jnp.allclose(jnp.where(kept, out_tr, 0.0),
                        jnp.where(kept, ref / (1.0 - p), 0.0),
                        atol=1e-5, rtol=1e-5)

    print("KERNEL_OK")
</pallas_src>

<mosaic_0001>
module attributes {stable_mosaic.version = 11 : i64} {
  func.func @_posenc_kernel_eval(%arg0: i32, %arg1: i32, %arg2: memref<2x256xf32, #tpu.memory_space<vmem>>, %arg3: memref<1x256xf32, #tpu.memory_space<vmem>>, %arg4: memref<2x256xf32, #tpu.memory_space<vmem>>) attributes {dimension_semantics = [#tpu.dimension_semantics<parallel>, #tpu.dimension_semantics<parallel>], iteration_bounds = array<i64: 1, 1>, scalar_prefetch = 0 : i64, scratch_operands = 0 : i64, tpu.core_type = #tpu.core_type<tc>, window_params = [{transform_indices = @transform_0, window_bounds = array<i64: 2, 256>}, {transform_indices = @transform_1, window_bounds = array<i64: 1, 256>}, {transform_indices = @transform_2, window_bounds = array<i64: 2, 256>}]} {
    %c0 = arith.constant 0 : index
    %c0_0 = arith.constant 0 : index
    %0 = vector.load %arg2[%c0, %c0_0] : memref<2x256xf32, #tpu.memory_space<vmem>>, vector<2x256xf32>
    %c0_1 = arith.constant 0 : index
    %c0_2 = arith.constant 0 : index
    %1 = vector.load %arg3[%c0_1, %c0_2] : memref<1x256xf32, #tpu.memory_space<vmem>>, vector<1x256xf32>
    %2 = vector.broadcast %1 : vector<1x256xf32> to vector<2x256xf32>
    %3 = arith.addf %0, %2 : vector<2x256xf32>
    %c0_3 = arith.constant 0 : index
    %c0_4 = arith.constant 0 : index
    %4 = vector.load %arg4[%c0_3, %c0_4] : memref<2x256xf32, #tpu.memory_space<vmem>>, vector<2x256xf32>
    tpu.vector_store %arg4[%c0_3, %c0_4], %3 {strides = array<i32>} : memref<2x256xf32, #tpu.memory_space<vmem>>, vector<2x256xf32>,
    return
  }
  func.func @transform_0(%arg0: i32, %arg1: i32) -> (i32, i32) {
    %c0_i32 = arith.constant 0 : i32
    return %arg0, %arg1 : i32, i32
  }
  func.func @transform_1(%arg0: i32, %arg1: i32) -> (i32, i32) {
    %c0_i32 = arith.constant 0 : i32
    %c0_i32_0 = arith.constant 0 : i32
    return %c0_i32, %arg1 : i32, i32
  }
  func.func @transform_2(%arg0: i32, %arg1: i32) -> (i32, i32) {
    %c0_i32 = arith.constant 0 : i32
    return %arg0, %arg1 : i32, i32
  }
}

</mosaic_0001>

<llo_original>
// kernel: tpu_custom_call.1
$region0: #{tpu_custom_call.1}
  #allocation0 [shape = 'u32[]', space=smem, size = 0x4, offset = 0x4, fixed_abs, tag = 'smem constant byte address 0x4 - core index']
  #allocation1 [shape = 'u32[72,128]{1,0:T(1,128)}', space=vmem, size = 0x9000, scoped, tag = 'internal scratch']
  %s0 = inlined_call_operand.hbm [shape: f32[2,256], index: 0, kind: input, shape index: {}]
  %s1 = inlined_call_operand.hbm [shape: f32[1,256], index: 1, kind: input, shape index: {}]
  %s2 = inlined_call_operand.hbm [shape: f32[2,256], index: 2, kind: output, shape index: {}]
  %s3 = sld [smem:[#allocation0]]
  $region26: #{tpu_custom_call.1} parent=0
    _
  %s5 = ssub.s32 1, %s3
  %s6 = scalar_select 0, %s5, %s3
  $region1: #{tpu_custom_call.1} parent=0
    #allocation2 [shape = 'u8[2048]{0}', space=vmem, size = 0x800, scoped, tag = 'input window, operand 0, single buffered']
    #allocation3 [shape = 's32[1]{0}', space=sflag, size = 0x4, scoped, tag = 'scoped memory for tpu_custom_call.1']
    #allocation4 [shape = 's32[1]{0}', space=sflag, size = 0x4, scoped, tag = 'scoped memory for tpu_custom_call.1']
    #allocation5 [shape = 'u8[1024]{0}', space=vmem, size = 0x400, scoped, tag = 'input window, operand 1, single buffered']
    #allocation6 [shape = 's32[1]{0}', space=sflag, size = 0x4, scoped, tag = 'scoped memory for tpu_custom_call.1']
    #allocation7 [shape = 'u8[2048]{0}', space=vmem, size = 0x800, scoped, tag = 'output window, operand 0, single buffered']
    %7 = vsyncpa [#allocation3], 0
    %8 = vsyncpa [#allocation6], 0
    %9 = vsyncpa [#allocation4], 0
    // Predicated region
    $region2: #{tpu_custom_call.1} parent=1 // pred_check
      _
    $region3: #{tpu_custom_call.1} parent=1 // pred_check_branch
      %11 = sbr.rel (0) target = $region5
    $region4: #{tpu_custom_call.1} parent=1 // pred_region
      %13 = vsyncadd [#allocation3], 0
      %s15 = sshll.u32 %s0, 4
      %s16 = int_to_ptr.hbm [resolvable:$true] %s15
      %s17 = sshll.u32 [#allocation2], 4
      %s18 = int_to_ptr.vmem [resolvable:$true] %s17
      %20 = dma.hbm_to_vmem [thread:$0]  %s16, 64, %s18, [#allocation3]
    $region5: #{tpu_custom_call.1} parent=1 // pred_fallthru
      _
    // Predicated region
    $region6: #{tpu_custom_call.1} parent=1 // pred_check
      _
    $region7: #{tpu_custom_call.1} parent=1 // pred_check_branch
      %22 = sbr.rel (0) target = $region9
    $region8: #{tpu_custom_call.1} parent=1 // pred_region
      %24 = vsyncadd [#allocation6], 0
      %s26 = sshll.u32 %s1, 4
      %s27 = int_to_ptr.hbm [resolvable:$true] %s26
      %s28 = sshll.u32 [#allocation5], 4
      %s29 = int_to_ptr.vmem [resolvable:$true] %s28
      %31 = dma.hbm_to_vmem [thread:$0]  %s27, 32, %s29, [#allocation6]
    $region9: #{tpu_custom_call.1} parent=1 // pred_fallthru
      _
    // Predicated region
    $region10: #{tpu_custom_call.1} parent=1 // pred_check
      _
    $region11: #{tpu_custom_call.1} parent=1 // pred_check_branch
      %33 = sbr.rel (0) target = $region13
    $region12: #{tpu_custom_call.1} parent=1 // pred_region
      %35 = dma.done [#allocation3], 64
    $region13: #{tpu_custom_call.1} parent=1 // pred_fallthru
      _
    // Predicated region
    $region14: #{tpu_custom_call.1} parent=1 // pred_check
      _
    $region15: #{tpu_custom_call.1} parent=1 // pred_check_branch
      %37 = sbr.rel (0) target = $region17
    $region16: #{tpu_custom_call.1} parent=1 // pred_region
      %39 = dma.done [#allocation6], 32
    $region17: #{tpu_custom_call.1} parent=1 // pred_fallthru
      _
    %v40 = vld [vmem:[#allocation2] sm:$0xf]
    %v41 = vld [vmem:[#allocation5] sm:$0x3]
    %v43 = vperm.slane %v41, 0
    %v44 = vperm.slane %v41, 1
    %v45 = vrot.slane %v44, 6
    %vm46 = vcmask 1041408
    %v47 = vsel %vm46, %v43, %v45
    %v49 = vadd.f32 %v40, %v47
    %50 = vst [vmem:[#allocation7] sm:$0xf] %v49
    // Predicated region
    $region18: #{tpu_custom_call.1} parent=1 // pred_check
      _
    $region19: #{tpu_custom_call.1} parent=1 // pred_check_branch
      %52 = sbr.rel (0) target = $region21
    $region20: #{tpu_custom_call.1} parent=1 // pred_region
      %54 = vsyncadd [#allocation4], 0
      %s56 = sshll.u32 [#allocation7], 4
      %s57 = int_to_ptr.vmem [resolvable:$true] %s56
      %s58 = sshll.u32 %s2, 4
      %s59 = int_to_ptr.hbm [resolvable:$true] %s58
      %61 = dma.vmem_to_hbm [thread:$0]  %s57, 64, %s59, [#allocation4]
    $region21: #{tpu_custom_call.1} parent=1 // pred_fallthru
      _
    // Predicated region
    $region22: #{tpu_custom_call.1} parent=1 // pred_check
      _
    $region23: #{tpu_custom_call.1} parent=1 // pred_check_branch
      %63 = sbr.rel (0) target = $region25
    $region24: #{tpu_custom_call.1} parent=1 // pred_region
      %65 = dma.done [#allocation4], 64
    $region25: #{tpu_custom_call.1} parent=1 // pred_fallthru
      _
    %66 = vsyncpa [#allocation3], 1
    %67 = vsyncpa [#allocation6], 1
    %68 = vsyncpa [#allocation4], 1

</llo_original>
